<compile_context>
chip_gen: v6e
topology: v6e:2x2x1
jax: 0.10.0
libtpu: 0.0.40
codegen_flags: <defaults>
</compile_context>

<pallas_src>
import functools

import jax
import jax.numpy as jnp
from jax.experimental import pallas as pl
from jax.experimental.pallas import tpu as pltpu

EPS = 1e-5
NEG_SLOPE = 0.2
HIDDEN = 32
LANES = 128
VMEM_LIMIT_BYTES = 32 * 1024 * 1024  # stay well under v7x's 64 MiB physical VMEM


def _bn_lrelu(h, gamma, beta):
    """BatchNorm1d (training mode, biased var) + LeakyReLU(0.2).

    One-pass variance: var = E[h^2] - mean^2 (independent reductions -> shorter
    dependent chain than two-pass).  O(1) activations + eps=1e-5 keep the
    cancellation error harmless; clamp at 0 for safety.
    """
    mean = jnp.mean(h, axis=0, keepdims=True)
    ex2 = jnp.mean(h * h, axis=0, keepdims=True)
    var = jnp.maximum(ex2 - mean * mean, 0.0)
    hn = (h - mean) * jax.lax.rsqrt(var + EPS) * gamma + beta
    # LeakyReLU(0.2): for hn>=0, hn >= 0.2*hn; for hn<0, 0.2*hn > hn.
    return jnp.maximum(hn, NEG_SLOPE * hn)


def generator_kernel(x_ref, p_ref, o_ref, *, input_dim, off):
    """One grid step = one full independent latent batch (BN over that batch)."""
    x = x_ref[...]  # (B, input_dim)

    def prow(name, nrows, ncols):
        r = off[name]  # static Python int -> static slice, zero-cost view
        return p_ref[r:r + nrows, 0:ncols]

    # Layer 1 (bias b1 dropped: exactly cancelled by training-mode BN mean-sub).
    h = jnp.dot(x, prow("w1", input_dim, HIDDEN), preferred_element_type=jnp.float32)
    h = _bn_lrelu(h, prow("g1", 1, HIDDEN), prow("be1", 1, HIDDEN))

    # Layer 2 (bias dropped, same reason).
    h = jnp.dot(h, prow("w2", HIDDEN, HIDDEN), preferred_element_type=jnp.float32)
    h = _bn_lrelu(h, prow("g2", 1, HIDDEN), prow("be2", 1, HIDDEN))

    # Layer 3 (bias dropped, same reason).
    h = jnp.dot(h, prow("w3", HIDDEN, HIDDEN), preferred_element_type=jnp.float32)
    h = _bn_lrelu(h, prow("g3", 1, HIDDEN), prow("be3", 1, HIDDEN))

    # Output layer: w4/b4 rows are lane-padded with zeros to 128 in the slab,
    # so the result is lane-dense and the final store is an unmasked vst.
    out = jnp.dot(h, prow("w4", HIDDEN, LANES), preferred_element_type=jnp.float32)
    out = out + prow("b4", 1, LANES)
    o_ref[...] = out.astype(o_ref.dtype)


def pack_params(params, input_dim, sign_dim):
    """Pack all parameters into ONE (R, 128) float32 lane-dense slab (host-side, once)."""
    assert sign_dim <= LANES, "sign_dim must be <= 128 for the single-slab packing"

    def pad_lanes(a):
        return jnp.pad(a, ((0, 0), (0, LANES - a.shape[1])))

    rows, offsets, r = [], {}, 0

    def add(name, a):
        nonlocal r
        offsets[name] = r
        rows.append(pad_lanes(a.astype(jnp.float32)))
        r += a.shape[0]

    add("w1", params["w1"])            # (input_dim, 32)
    add("w2", params["w2"])            # (32, 32)
    add("w3", params["w3"])            # (32, 32)
    add("w4", params["w4"])            # (32, sign_dim) -> padded to 128 lanes
    for i in (1, 2, 3):
        add(f"g{i}", params[f"g{i}"])  # (1, 32)
        add(f"be{i}", params[f"be{i}"])
    add("b4", params["b4"])            # (1, sign_dim) -> padded to 128 lanes

    slab = jnp.concatenate(rows, axis=0)
    r_pad = ((slab.shape[0] + 7) // 8) * 8  # sublane-align the slab
    slab = jnp.pad(slab, ((0, r_pad - slab.shape[0]), (0, 0)))

    return {"slab": slab, "offsets": offsets,
            "input_dim": input_dim, "sign_dim": sign_dim}


def generator_forward(x_groups, packed):
    """Generator forward for G independent latent batches.

    x_groups: (G, B, input_dim).  Each of the G groups is one full batch
    (BatchNorm stats computed per group, exactly like G separate module calls).
    Returns the lane-padded output (G, B, 128); real values are [..., :sign_dim]
    (left padded so downstream consumers can fuse the slice instead of an
    eager wrapper-side gather).
    """
    G, B, input_dim = x_groups.shape
    assert input_dim == packed["input_dim"]
    slab = packed["slab"]

    # Full-batch-in-VMEM ceiling: x + padded out (double-buffered by the
    # pipeline) + live hidden activations + the parameter slab.
    live_bytes = 4 * (2 * B * input_dim + 2 * B * LANES + 3 * B * HIDDEN) + 4 * slab.size
    assert live_bytes < VMEM_LIMIT_BYTES, (
        f"batch per group too large for VMEM budget ({live_bytes} B)")

    kernel = functools.partial(
        generator_kernel, input_dim=input_dim, off=packed["offsets"])

    return pl.pallas_call(
        kernel,
        out_shape=jax.ShapeDtypeStruct((G, B, LANES), jnp.float32),
        grid=(G,),
        in_specs=[
            # One full batch per grid step (leading group dim squeezed away).
            pl.BlockSpec((None, B, input_dim), lambda g: (g, 0, 0)),
            # Single parameter slab, same block every step -> DMA'd once per core.
            pl.BlockSpec(slab.shape, lambda g: (0, 0)),
        ],
        out_specs=pl.BlockSpec((None, B, LANES), lambda g: (g, 0, 0)),
        compiler_params=pltpu.CompilerParams(
            dimension_semantics=("parallel",),  # shard groups across v7x's 2 TCs
            vmem_limit_bytes=VMEM_LIMIT_BYTES),
    )(x_groups, slab)


def init_params(key, input_dim, sign_dim):
    """Deterministic init mimicking PyTorch nn.Linear defaults
    (uniform(-1/sqrt(fan_in), 1/sqrt(fan_in))) and BatchNorm1d (gamma=1, beta=0)."""
    dims = [(input_dim, HIDDEN), (HIDDEN, HIDDEN), (HIDDEN, HIDDEN), (HIDDEN, sign_dim)]
    params = {}
    for i, (fan_in, fan_out) in enumerate(dims, start=1):
        key, kw, kb = jax.random.split(key, 3)
        bound = 1.0 / jnp.sqrt(float(fan_in))
        params[f"w{i}"] = jax.random.uniform(
            kw, (fan_in, fan_out), jnp.float32, -bound, bound)
        params[f"b{i}"] = jax.random.uniform(
            kb, (1, fan_out), jnp.float32, -bound, bound)
    for i in (1, 2, 3):
        params[f"g{i}"] = jnp.ones((1, HIDDEN), jnp.float32)
        params[f"be{i}"] = jnp.zeros((1, HIDDEN), jnp.float32)
    return params


def _bn_lrelu_ref(h, gamma, beta):
    mean = jnp.mean(h, axis=0, keepdims=True)
    var = jnp.mean((h - mean) ** 2, axis=0, keepdims=True)
    hn = (h - mean) * jax.lax.rsqrt(var + EPS) * gamma + beta
    return jnp.where(hn >= 0, hn, NEG_SLOPE * hn)


def reference_forward(x, params):
    """Pure-JAX, PyTorch-faithful reference (keeps the pre-BN biases b1..b3,
    two-pass variance)."""
    h = x @ params["w1"] + params["b1"]
    h = _bn_lrelu_ref(h, params["g1"], params["be1"])
    h = h @ params["w2"] + params["b2"]
    h = _bn_lrelu_ref(h, params["g2"], params["be2"])
    h = h @ params["w3"] + params["b3"]
    h = _bn_lrelu_ref(h, params["g3"], params["be3"])
    return h @ params["w4"] + params["b4"]


if __name__ == "__main__":
    key = jax.random.PRNGKey(0)
    key, kx, kp = jax.random.split(key, 3)

    groups = 4       # independent latent batches per pallas_call (grid axis)
    batch = 64       # batch per group (BatchNorm stats per group)
    input_dim = 16   # latent noise dim
    sign_dim = 8     # generated signal dim

    x = jax.random.normal(kx, (groups, batch, input_dim), jnp.float32)
    params = init_params(kp, input_dim, sign_dim)
    packed = pack_params(params, input_dim, sign_dim)

    out_padded = jax.block_until_ready(generator_forward(x, packed))
    assert out_padded.shape == (groups, batch, LANES)

    # Demo-only: strip lane padding to compare against the per-group reference.
    out = out_padded[..., :sign_dim]
    ref = jnp.stack([reference_forward(x[g], params) for g in range(groups)], axis=0)

    assert out.shape == (groups, batch, sign_dim)
    assert jnp.allclose(out, ref, atol=1e-4, rtol=1e-4)

    print("KERNEL_OK")
</pallas_src>

<mosaic_0001>
module attributes {stable_mosaic.version = 11 : i64} {
  func.func @generator_kernel(%arg0: i32, %arg1: memref<1x64x16xf32, #tpu.memory_space<vmem>>, %arg2: memref<120x128xf32, #tpu.memory_space<vmem>>, %arg3: memref<1x64x128xf32, #tpu.memory_space<vmem>>) attributes {dimension_semantics = [#tpu.dimension_semantics<parallel>], iteration_bounds = array<i64: 4>, scalar_prefetch = 0 : i64, scratch_operands = 0 : i64, tpu.core_type = #tpu.core_type<tc>, window_params = [{transform_indices = @transform_0, window_bounds = array<i64: 1, 64, 16>}, {pipeline_mode = #tpu.pipeline_mode<synchronous>, transform_indices = @transform_1, window_bounds = array<i64: 120, 128>}, {transform_indices = @transform_2, window_bounds = array<i64: 1, 64, 128>}]} {
    %c0 = arith.constant 0 : index
    %c0_0 = arith.constant 0 : index
    %c0_1 = arith.constant 0 : index
    %0 = vector.load %arg1[%c0, %c0_0, %c0_1] : memref<1x64x16xf32, #tpu.memory_space<vmem>>, vector<1x64x16xf32>
    %1 = vector.shape_cast %0 : vector<1x64x16xf32> to vector<64x16xf32>
    %c0_2 = arith.constant 0 : index
    %c0_3 = arith.constant 0 : index
    %2 = vector.load %arg2[%c0_2, %c0_3] : memref<120x128xf32, #tpu.memory_space<vmem>>, vector<16x32xf32>
    %cst = arith.constant dense<0.000000e+00> : vector<64x32xf32>
    %3 = tpu.matmul %1, %2, %cst {dimension_numbers = #tpu.dot_dimension_numbers<[1], [0], [0], [1], [0, 0, 1, 1], [], []>} : vector<64x16xf32>, vector<16x32xf32>, vector<64x32xf32> -> vector<64x32xf32>
    %c112 = arith.constant 112 : index
    %c0_4 = arith.constant 0 : index
    %4 = vector.load %arg2[%c112, %c0_4] : memref<120x128xf32, #tpu.memory_space<vmem>>, vector<1x32xf32>
    %c113 = arith.constant 113 : index
    %c0_5 = arith.constant 0 : index
    %5 = vector.load %arg2[%c113, %c0_5] : memref<120x128xf32, #tpu.memory_space<vmem>>, vector<1x32xf32>
    %cst_6 = arith.constant dense<0.000000e+00> : vector<32xf32>
    %6 = vector.multi_reduction <add>, %3, %cst_6 [0] : vector<64x32xf32> to vector<32xf32>
    %7 = vector.shape_cast %6 : vector<32xf32> to vector<1x32xf32>
    %cst_7 = arith.constant 6.400000e+01 : f32
    %8 = vector.broadcast %cst_7 : f32 to vector<1x32xf32>
    %9 = arith.divf %7, %8 : vector<1x32xf32>
    %10 = arith.mulf %3, %3 : vector<64x32xf32>
    %cst_8 = arith.constant dense<0.000000e+00> : vector<32xf32>
    %11 = vector.multi_reduction <add>, %10, %cst_8 [0] : vector<64x32xf32> to vector<32xf32>
    %12 = vector.shape_cast %11 : vector<32xf32> to vector<1x32xf32>
    %cst_9 = arith.constant 6.400000e+01 : f32
    %13 = vector.broadcast %cst_9 : f32 to vector<1x32xf32>
    %14 = arith.divf %12, %13 : vector<1x32xf32>
    %15 = arith.mulf %9, %9 : vector<1x32xf32>
    %16 = arith.subf %14, %15 : vector<1x32xf32>
    %cst_10 = arith.constant 0.000000e+00 : f32
    %17 = vector.broadcast %cst_10 : f32 to vector<1x32xf32>
    %18 = arith.maximumf %16, %17 : vector<1x32xf32>
    %19 = vector.broadcast %9 : vector<1x32xf32> to vector<64x32xf32>
    %20 = arith.subf %3, %19 : vector<64x32xf32>
    %cst_11 = arith.constant 9.99999974E-6 : f32
    %21 = vector.broadcast %cst_11 : f32 to vector<1x32xf32>
    %22 = arith.addf %18, %21 : vector<1x32xf32>
    %23 = math.rsqrt %22 : vector<1x32xf32>
    %24 = vector.broadcast %23 : vector<1x32xf32> to vector<64x32xf32>
    %25 = arith.mulf %20, %24 : vector<64x32xf32>
    %26 = vector.broadcast %4 : vector<1x32xf32> to vector<64x32xf32>
    %27 = arith.mulf %25, %26 : vector<64x32xf32>
    %28 = vector.broadcast %5 : vector<1x32xf32> to vector<64x32xf32>
    %29 = arith.addf %27, %28 : vector<64x32xf32>
    %cst_12 = arith.constant 2.000000e-01 : f32
    %30 = vector.broadcast %cst_12 : f32 to vector<64x32xf32>
    %31 = arith.mulf %30, %29 : vector<64x32xf32>
    %32 = arith.maximumf %29, %31 : vector<64x32xf32>
    %c16 = arith.constant 16 : index
    %c0_13 = arith.constant 0 : index
    %33 = vector.load %arg2[%c16, %c0_13] : memref<120x128xf32, #tpu.memory_space<vmem>>, vector<32x32xf32>
    %cst_14 = arith.constant dense<0.000000e+00> : vector<64x32xf32>
    %34 = tpu.matmul %32, %33, %cst_14 {dimension_numbers = #tpu.dot_dimension_numbers<[1], [0], [0], [1], [0, 0, 1, 1], [], []>} : vector<64x32xf32>, vector<32x32xf32>, vector<64x32xf32> -> vector<64x32xf32>
    %c114 = arith.constant 114 : index
    %c0_15 = arith.constant 0 : index
    %35 = vector.load %arg2[%c114, %c0_15] : memref<120x128xf32, #tpu.memory_space<vmem>>, vector<1x32xf32>
    %c115 = arith.constant 115 : index
    %c0_16 = arith.constant 0 : index
    %36 = vector.load %arg2[%c115, %c0_16] : memref<120x128xf32, #tpu.memory_space<vmem>>, vector<1x32xf32>
    %cst_17 = arith.constant dense<0.000000e+00> : vector<32xf32>
    %37 = vector.multi_reduction <add>, %34, %cst_17 [0] : vector<64x32xf32> to vector<32xf32>
    %38 = vector.shape_cast %37 : vector<32xf32> to vector<1x32xf32>
    %cst_18 = arith.constant 6.400000e+01 : f32
    %39 = vector.broadcast %cst_18 : f32 to vector<1x32xf32>
    %40 = arith.divf %38, %39 : vector<1x32xf32>
    %41 = arith.mulf %34, %34 : vector<64x32xf32>
    %cst_19 = arith.constant dense<0.000000e+00> : vector<32xf32>
    %42 = vector.multi_reduction <add>, %41, %cst_19 [0] : vector<64x32xf32> to vector<32xf32>
    %43 = vector.shape_cast %42 : vector<32xf32> to vector<1x32xf32>
    %cst_20 = arith.constant 6.400000e+01 : f32
    %44 = vector.broadcast %cst_20 : f32 to vector<1x32xf32>
    %45 = arith.divf %43, %44 : vector<1x32xf32>
    %46 = arith.mulf %40, %40 : vector<1x32xf32>
    %47 = arith.subf %45, %46 : vector<1x32xf32>
    %cst_21 = arith.constant 0.000000e+00 : f32
    %48 = vector.broadcast %cst_21 : f32 to vector<1x32xf32>
    %49 = arith.maximumf %47, %48 : vector<1x32xf32>
    %50 = vector.broadcast %40 : vector<1x32xf32> to vector<64x32xf32>
    %51 = arith.subf %34, %50 : vector<64x32xf32>
    %cst_22 = arith.constant 9.99999974E-6 : f32
    %52 = vector.broadcast %cst_22 : f32 to vector<1x32xf32>
    %53 = arith.addf %49, %52 : vector<1x32xf32>
    %54 = math.rsqrt %53 : vector<1x32xf32>
    %55 = vector.broadcast %54 : vector<1x32xf32> to vector<64x32xf32>
    %56 = arith.mulf %51, %55 : vector<64x32xf32>
    %57 = vector.broadcast %35 : vector<1x32xf32> to vector<64x32xf32>
    %58 = arith.mulf %56, %57 : vector<64x32xf32>
    %59 = vector.broadcast %36 : vector<1x32xf32> to vector<64x32xf32>
    %60 = arith.addf %58, %59 : vector<64x32xf32>
    %cst_23 = arith.constant 2.000000e-01 : f32
    %61 = vector.broadcast %cst_23 : f32 to vector<64x32xf32>
    %62 = arith.mulf %61, %60 : vector<64x32xf32>
    %63 = arith.maximumf %60, %62 : vector<64x32xf32>
    %c48 = arith.constant 48 : index
    %c0_24 = arith.constant 0 : index
    %64 = vector.load %arg2[%c48, %c0_24] : memref<120x128xf32, #tpu.memory_space<vmem>>, vector<32x32xf32>
    %cst_25 = arith.constant dense<0.000000e+00> : vector<64x32xf32>
    %65 = tpu.matmul %63, %64, %cst_25 {dimension_numbers = #tpu.dot_dimension_numbers<[1], [0], [0], [1], [0, 0, 1, 1], [], []>} : vector<64x32xf32>, vector<32x32xf32>, vector<64x32xf32> -> vector<64x32xf32>
    %c116 = arith.constant 116 : index
    %c0_26 = arith.constant 0 : index
    %66 = vector.load %arg2[%c116, %c0_26] : memref<120x128xf32, #tpu.memory_space<vmem>>, vector<1x32xf32>
    %c117 = arith.constant 117 : index
    %c0_27 = arith.constant 0 : index
    %67 = vector.load %arg2[%c117, %c0_27] : memref<120x128xf32, #tpu.memory_space<vmem>>, vector<1x32xf32>
    %cst_28 = arith.constant dense<0.000000e+00> : vector<32xf32>
    %68 = vector.multi_reduction <add>, %65, %cst_28 [0] : vector<64x32xf32> to vector<32xf32>
    %69 = vector.shape_cast %68 : vector<32xf32> to vector<1x32xf32>
    %cst_29 = arith.constant 6.400000e+01 : f32
    %70 = vector.broadcast %cst_29 : f32 to vector<1x32xf32>
    %71 = arith.divf %69, %70 : vector<1x32xf32>
    %72 = arith.mulf %65, %65 : vector<64x32xf32>
    %cst_30 = arith.constant dense<0.000000e+00> : vector<32xf32>
    %73 = vector.multi_reduction <add>, %72, %cst_30 [0] : vector<64x32xf32> to vector<32xf32>
    %74 = vector.shape_cast %73 : vector<32xf32> to vector<1x32xf32>
    %cst_31 = arith.constant 6.400000e+01 : f32
    %75 = vector.broadcast %cst_31 : f32 to vector<1x32xf32>
    %76 = arith.divf %74, %75 : vector<1x32xf32>
    %77 = arith.mulf %71, %71 : vector<1x32xf32>
    %78 = arith.subf %76, %77 : vector<1x32xf32>
    %cst_32 = arith.constant 0.000000e+00 : f32
    %79 = vector.broadcast %cst_32 : f32 to vector<1x32xf32>
    %80 = arith.maximumf %78, %79 : vector<1x32xf32>
    %81 = vector.broadcast %71 : vector<1x32xf32> to vector<64x32xf32>
    %82 = arith.subf %65, %81 : vector<64x32xf32>
    %cst_33 = arith.constant 9.99999974E-6 : f32
    %83 = vector.broadcast %cst_33 : f32 to vector<1x32xf32>
    %84 = arith.addf %80, %83 : vector<1x32xf32>
    %85 = math.rsqrt %84 : vector<1x32xf32>
    %86 = vector.broadcast %85 : vector<1x32xf32> to vector<64x32xf32>
    %87 = arith.mulf %82, %86 : vector<64x32xf32>
    %88 = vector.broadcast %66 : vector<1x32xf32> to vector<64x32xf32>
    %89 = arith.mulf %87, %88 : vector<64x32xf32>
    %90 = vector.broadcast %67 : vector<1x32xf32> to vector<64x32xf32>
    %91 = arith.addf %89, %90 : vector<64x32xf32>
    %cst_34 = arith.constant 2.000000e-01 : f32
    %92 = vector.broadcast %cst_34 : f32 to vector<64x32xf32>
    %93 = arith.mulf %92, %91 : vector<64x32xf32>
    %94 = arith.maximumf %91, %93 : vector<64x32xf32>
    %c80 = arith.constant 80 : index
    %c0_35 = arith.constant 0 : index
    %95 = vector.load %arg2[%c80, %c0_35] : memref<120x128xf32, #tpu.memory_space<vmem>>, vector<32x128xf32>
    %cst_36 = arith.constant dense<0.000000e+00> : vector<64x128xf32>
    %96 = tpu.matmul %94, %95, %cst_36 {dimension_numbers = #tpu.dot_dimension_numbers<[1], [0], [0], [1], [0, 0, 1, 1], [], []>} : vector<64x32xf32>, vector<32x128xf32>, vector<64x128xf32> -> vector<64x128xf32>
    %c118 = arith.constant 118 : index
    %c0_37 = arith.constant 0 : index
    %97 = vector.load %arg2[%c118, %c0_37] : memref<120x128xf32, #tpu.memory_space<vmem>>, vector<1x128xf32>
    %98 = vector.broadcast %97 : vector<1x128xf32> to vector<64x128xf32>
    %99 = arith.addf %96, %98 : vector<64x128xf32>
    %c0_38 = arith.constant 0 : index
    %c0_39 = arith.constant 0 : index
    %c0_40 = arith.constant 0 : index
    %100 = vector.load %arg3[%c0_38, %c0_39, %c0_40] : memref<1x64x128xf32, #tpu.memory_space<vmem>>, vector<1x64x128xf32>
    %101 = vector.shape_cast %100 : vector<1x64x128xf32> to vector<64x128xf32>
    %102 = vector.shape_cast %99 : vector<64x128xf32> to vector<1x64x128xf32>
    tpu.vector_store %arg3[%c0_38, %c0_39, %c0_40], %102 {strides = array<i32>} : memref<1x64x128xf32, #tpu.memory_space<vmem>>, vector<1x64x128xf32>,
    return
  }
  func.func @transform_0(%arg0: i32) -> (i32, i32, i32) {
    %c0_i32 = arith.constant 0 : i32
    %c0_i32_0 = arith.constant 0 : i32
    %c0_i32_1 = arith.constant 0 : i32
    return %arg0, %c0_i32, %c0_i32_0 : i32, i32, i32
  }
  func.func @transform_1(%arg0: i32) -> (i32, i32) {
    %c0_i32 = arith.constant 0 : i32
    %c0_i32_0 = arith.constant 0 : i32
    %c0_i32_1 = arith.constant 0 : i32
    return %c0_i32, %c0_i32_0 : i32, i32
  }
  func.func @transform_2(%arg0: i32) -> (i32, i32, i32) {
    %c0_i32 = arith.constant 0 : i32
    %c0_i32_0 = arith.constant 0 : i32
    %c0_i32_1 = arith.constant 0 : i32
    return %arg0, %c0_i32, %c0_i32_0 : i32, i32, i32
  }
}

</mosaic_0001>

<llo_original>
// kernel: tpu_custom_call.1
$region0: #{tpu_custom_call.1}
  #allocation0 [shape = 'u32[]', space=smem, size = 0x4, offset = 0x4, fixed_abs, tag = 'smem constant byte address 0x4 - core index']
  #allocation1 [shape = 'u32[144,128]{1,0:T(1,128)}', space=vmem, size = 0x12000, scoped, tag = 'internal scratch']
  %s0 = inlined_call_operand.vmem [shape: f32[4,64,16], index: 0, kind: input, shape index: {}]
  %s1 = inlined_call_operand.vmem [shape: f32[120,128], index: 1, kind: input, shape index: {}]
  %s2 = inlined_call_operand.hbm [shape: f32[4,64,128], index: 2, kind: output, shape index: {}]
  %s3 = sld [smem:[#allocation0]]
  $region41: #{tpu_custom_call.1} parent=0
    _
  %s5 = ssub.s32 1, %s3
  %s6 = scalar_select 0, %s5, %s3
  $region1: #{tpu_custom_call.1} parent=0
    #allocation2 [shape = 'u8[65536]{0}', space=vmem, size = 0x10000, scoped, tag = 'output window, operand 0']
    #allocation3 [shape = 's32[2]{0}', space=sflag, size = 0x8, scoped, tag = 'scoped memory for tpu_custom_call.1']
    %7 = vsyncpa [#allocation3], 0
    %s8 = scalar_lea.sflag [#allocation3], 1
    %9 = vsyncpa %s8, 0
    loop: start=0, step=1, limit=6
    $region2: #{tpu_custom_call.1} parent=1 // loop_pre_header
      _
    $region3: #{tpu_custom_call.1} parent=1 // loop_header
      %s11 = sphi 0, %s15
      %p12 = scmp.ge.s32.totalorder %s11, 6
      %s21 = sphi 0, %s23
      %s24 = sphi 0, %s21
      %s25 = sphi 0, %s24
      %s41 = sphi 0, %s25
      %s45 = sphi 0, %s45
      %s47 = sphi 0, %s45
      %s48 = sphi 0, %s47
      %s62 = sphi 0, %s48
      %s68 = sphi 0, %s70
      %s71 = sphi 0, %s68
      %s72 = sphi 0, %s71
      %s88 = sphi 0, %s72
    $region4: #{tpu_custom_call.1} parent=1 // loop_header_branch
      %14 = sbr.rel (%p12) target = $region8
    $region5: #{tpu_custom_call.1} parent=1 // loop_body
      %s16 = ssub.s32 %s11, 1
      %s17 = ssub.s32 %s11, 2
      %s18 = sadd.s32 %s11, 1
      %s19 = ssub.s32 %s11, %s18
      %p20 = scmp.eq.s32.totalorder %s19, 0
      %s22 = sadd.s32 %s21, 1
      %s23 = scalar_select %p20, %s21, %s22
      %p26 = pneg %p20
      %p27 = scmp.eq.s32.totalorder %s11, 3
      %p28 = por %p26, %p27
      %p29 = scmp.ne.s32.totalorder %s21, %s24
      %p30 = scmp.eq.s32.totalorder %s11, 0
      %p31 = por %p29, %p30
      %p32 = scmp.ne.s32.totalorder %s21, %s24
      %p33 = scmp.eq.s32.totalorder %s16, 3
      %p34 = por %p32, %p33
      %p35 = scmp.ne.s32.totalorder %s24, %s25
      %p36 = scmp.eq.s32.totalorder %s16, 0
      %p37 = por %p35, %p36
      %p38 = scmp.ne.s32.totalorder %s24, %s25
      %p39 = scmp.eq.s32.totalorder %s17, 3
      %p40 = por %p38, %p39
      %p42 = scmp.ne.s32.totalorder %s25, %s41
      %p43 = scmp.eq.s32.totalorder %s17, 0
      %p44 = por %p42, %p43
      %s46 = sadd.s32 %s45, 1
      %p49 = scmp.eq.s32.totalorder %s11, 3
      %p50 = scmp.ne.s32.totalorder %s45, %s47
      %p51 = scmp.eq.s32.totalorder %s11, 0
      %p52 = por %p50, %p51
      %p53 = scmp.ne.s32.totalorder %s45, %s47
      %p54 = scmp.eq.s32.totalorder %s16, 3
      %p55 = por %p53, %p54
      %p56 = scmp.ne.s32.totalorder %s47, %s48
      %p57 = scmp.eq.s32.totalorder %s16, 0
      %p58 = por %p56, %p57
      %p59 = scmp.ne.s32.totalorder %s47, %s48
      %p60 = scmp.eq.s32.totalorder %s17, 3
      %p61 = por %p59, %p60
      %p63 = scmp.ne.s32.totalorder %s48, %s62
      %p64 = scmp.eq.s32.totalorder %s17, 0
      %p65 = por %p63, %p64
      %s66 = ssub.s32 %s11, %s18
      %p67 = scmp.eq.s32.totalorder %s66, 0
      %s69 = sadd.s32 %s68, 1
      %s70 = scalar_select %p67, %s68, %s69
      %p73 = pneg %p67
      %p74 = scmp.eq.s32.totalorder %s11, 3
      %p75 = por %p73, %p74
      %p76 = scmp.ne.s32.totalorder %s68, %s71
      %p77 = scmp.eq.s32.totalorder %s11, 0
      %p78 = por %p76, %p77
      %p79 = scmp.ne.s32.totalorder %s68, %s71
      %p80 = scmp.eq.s32.totalorder %s16, 3
      %p81 = por %p79, %p80
      %p82 = scmp.ne.s32.totalorder %s71, %s72
      %p83 = scmp.eq.s32.totalorder %s16, 0
      %p84 = por %p82, %p83
      %p85 = scmp.ne.s32.totalorder %s71, %s72
      %p86 = scmp.eq.s32.totalorder %s17, 3
      %p87 = por %p85, %p86
      %p89 = scmp.ne.s32.totalorder %s72, %s88
      %p90 = scmp.eq.s32.totalorder %s17, 0
      %p91 = por %p89, %p90
      %p92 = scmp.le.s32.totalorder 1, %s11
      %p93 = scmp.lt.s32.totalorder %s11, 5
      %p94 = pnand %p92, %p93
      %p95 = pneg %p94
      // Predicated region
      $region9: #{tpu_custom_call.1} parent=5 // pred_check
        _
      $region10: #{tpu_custom_call.1} parent=5 // pred_check_branch
        %97 = sbr.rel (%p94) target = $region12
      $region11: #{tpu_custom_call.1} parent=5 // pred_region
        %s98 = ssub.s32 %s11, 1
        // Predicated region
        $region13: #{tpu_custom_call.1} parent=11 // pred_check
          %p99 = pneg %p58
        $region14: #{tpu_custom_call.1} parent=11 // pred_check_branch
          %101 = sbr.rel (%p99) target = $region16
        $region15: #{tpu_custom_call.1} parent=11 // pred_region
          _
        $region16: #{tpu_custom_call.1} parent=11 // pred_fallthru
          _
      $region12: #{tpu_custom_call.1} parent=5 // pred_fallthru
        _
      %p102 = scmp.lt.s32.totalorder %s11, 4
      // Predicated region
      $region17: #{tpu_custom_call.1} parent=5 // pred_check
        %p103 = pneg %p102
      $region18: #{tpu_custom_call.1} parent=5 // pred_check_branch
        %105 = sbr.rel (%p103) target = $region20
      $region19: #{tpu_custom_call.1} parent=5 // pred_region
        // Predicated region
        $region21: #{tpu_custom_call.1} parent=19 // pred_check
          %p106 = pneg %p31
        $region22: #{tpu_custom_call.1} parent=19 // pred_check_branch
          %108 = sbr.rel (%p106) target = $region24
        $region23: #{tpu_custom_call.1} parent=19 // pred_region
          %p109 = scmp.lt.s32.totalorder %s11, 3
          %s110 = scalar_select %p109, %s11, 3
          %s111 = smul.addr %s110, 8
          %s112 = smul.addr %s111, 8
          %s113 = scalar_lea.vmem %s0, %s112
        $region24: #{tpu_custom_call.1} parent=19 // pred_fallthru
          _
      $region20: #{tpu_custom_call.1} parent=5 // pred_fallthru
        _
      %p114 = scmp.le.s32.totalorder 1, %s11
      %p115 = scmp.lt.s32.totalorder %s11, 5
      %p116 = pnand %p114, %p115
      %p117 = pneg %p116
      // Predicated region
      $region25: #{tpu_custom_call.1} parent=5 // pred_check
        _
      $region26: #{tpu_custom_call.1} parent=5 // pred_check_branch
        %119 = sbr.rel (%p116) target = $region28
      $region27: #{tpu_custom_call.1} parent=5 // pred_region
        %s120 = ssub.s32 %s11, 1
        %p121 = scmp.lt.s32.totalorder %s16, 3
        %s122 = scalar_select %p121, %s16, 3
        %s123 = smul.addr %s122, 8
        %s124 = smul.addr %s123, 8
        %s125 = scalar_lea.vmem %s0, %s124
        %p126 = pneg %p37
        %p127 = pneg %p34
        %p128 = pneg %p58
        %p129 = pneg %p55
        %p130 = pneg %p84
        %p131 = pneg %p81
        %s132 = sand.u32 %s71, 1
        %s133 = scalar_lea.sflag [#allocation3], %s132
        %s134 = sand.u32 %s71, 1
        %s135 = smul.addr %s134, 64
        %s136 = scalar_lea.vmem [#allocation2], %s135
        %p137 = scmp.lt.s32.totalorder %s16, 3
        %s138 = scalar_select %p137, %s16, 3
        %s139 = smul.addr %s138, 8
        %s140 = smul.addr %s139, 8
        %s141 = scalar_lea.vmem %s0, %s140
        %v142 = vld [vmem:[%s141] sm:$0xff]
        %v143 = vld [vmem:[%s141 + $0x8] sm:$0xff]
        %v144 = vld [vmem:[%s141 + $0x10] sm:$0xff]
        %v145 = vld [vmem:[%s141 + $0x18] sm:$0xff]
        %v146 = vld [vmem:[%s141 + $0x20] sm:$0xff]
        %v147 = vld [vmem:[%s141 + $0x28] sm:$0xff]
        %v148 = vld [vmem:[%s141 + $0x30] sm:$0xff]
        %v149 = vld [vmem:[%s141 + $0x38] sm:$0xff]
        %v150 = vld [vmem:[%s1] sm:$0xff]
        %v151 = vld [vmem:[%s1 + $0x8] sm:$0xff]
        %vm152 = vcmask 130048
        %v154 = vsel %vm152, %v142, 0
        %v157 = vsel %vm152, %v143, 0
        %v160 = vsel %vm152, %v144, 0
        %v163 = vsel %vm152, %v145, 0
        %v166 = vsel %vm152, %v146, 0
        %v169 = vsel %vm152, %v147, 0
        %v172 = vsel %vm152, %v148, 0
        %v175 = vsel %vm152, %v149, 0
        %177 = vmatprep.subr.mxu0 0.0
        %178 = vmatpush1.msra.mxu0 0.0
        %179 = vmatprep.subr.mxu0 0.0
        %180 = vmatpush1.msra.mxu0 0.0
        %181 = vmatprep.subr.mxu0 0.0
        %182 = vmatpush1.msra.mxu0 0.0
        %183 = vmatprep.subr.mxu0 0.0
        %184 = vmatpush1.msra.mxu0 0.0
        %185 = vmatprep.subr.mxu0 0.0
        %186 = vmatpush1.msra.mxu0 0.0
        %187 = vmatprep.subr.mxu0 0.0
        %188 = vmatpush1.msra.mxu0 0.0
        %189 = vmatprep.subr.mxu0 0.0
        %190 = vmatpush1.msra.mxu0 0.0
        %191 = vmatprep.subr.mxu0 0.0
        %192 = vmatpush1.msra.mxu0 0.0
        %193 = vmatprep.subr.mxu0 0.0
        %194 = vmatpush1.msra.mxu0 0.0
        %195 = vmatprep.subr.mxu0 0.0
        %196 = vmatpush1.msra.mxu0 0.0
        %197 = vmatprep.subr.mxu0 0.0
        %198 = vmatpush1.msra.mxu0 0.0
        %199 = vmatprep.subr.mxu0 0.0
        %200 = vmatpush1.msra.mxu0 0.0
        %201 = vmatprep.subr.mxu0 0.0
        %202 = vmatpush1.msra.mxu0 0.0
        %203 = vmatprep.subr.mxu0 0.0
        %204 = vmatpush1.msra.mxu0 0.0
        %205 = vmatprep.subr.mxu0 0.0
        %206 = vmatpush1.msra.mxu0 %v151
        %207 = vmatprep.subr.mxu0 0.0
        %208 = vmatpush1.msra.mxu0 %v150
        %209 = vmatprep.subr.mxu0 0.0
        %210 = vmatpush2.msra.mxu0 0.0
        %211 = vmatprep.subr.mxu0 0.0
        %212 = vmatpush2.msra.mxu0 0.0
        %213 = vmatprep.subr.mxu0 0.0
        %214 = vmatpush2.msra.mxu0 0.0
        %215 = vmatprep.subr.mxu0 0.0
        %216 = vmatpush2.msra.mxu0 0.0
        %217 = vmatprep.subr.mxu0 0.0
        %218 = vmatpush2.msra.mxu0 0.0
        %219 = vmatprep.subr.mxu0 0.0
        %220 = vmatpush2.msra.mxu0 0.0
        %221 = vmatprep.subr.mxu0 0.0
        %222 = vmatpush2.msra.mxu0 0.0
        %223 = vmatprep.subr.mxu0 0.0
        %224 = vmatpush2.msra.mxu0 0.0
        %225 = vmatprep.subr.mxu0 0.0
        %226 = vmatpush2.msra.mxu0 0.0
        %227 = vmatprep.subr.mxu0 0.0
        %228 = vmatpush2.msra.mxu0 0.0
        %229 = vmatprep.subr.mxu0 0.0
        %230 = vmatpush2.msra.mxu0 0.0
        %231 = vmatprep.subr.mxu0 0.0
        %232 = vmatpush2.msra.mxu0 0.0
        %233 = vmatprep.subr.mxu0 0.0
        %234 = vmatpush2.msra.mxu0 0.0
        %235 = vmatprep.subr.mxu0 0.0
        %236 = vmatpush2.msra.mxu0 0.0
        %237 = vmatprep.subr.mxu0 0.0
        %238 = vmatpush2.msra.mxu0 0.0
        %239 = vmatprep.subr.mxu0 0.0
        %240 = vmatpush2.msra.mxu0 0.0
        %241 = vmatprep.mubr.f32.mxu0 0.0
        %242 = vmatmul.mubr.f32.gmra.mxu0 %v154
        %v243 = vpop.f32.mrf.mxu0
        %v244 = vadd.f32 0.0, %v243
        %v245 = vpop.f32.mrf.mxu0
        %246 = vmatprep.mubr.f32.mxu0 0.0
        %247 = vmatmul.mubr.f32.gmra.mxu0 %v157
        %v248 = vpop.f32.mrf.mxu0
        %v249 = vadd.f32 0.0, %v248
        %v250 = vpop.f32.mrf.mxu0
        %251 = vmatprep.mubr.f32.mxu0 0.0
        %252 = vmatmul.mubr.f32.gmra.mxu0 %v160
        %v253 = vpop.f32.mrf.mxu0
        %v254 = vadd.f32 0.0, %v253
        %v255 = vpop.f32.mrf.mxu0
        %256 = vmatprep.mubr.f32.mxu0 0.0
        %257 = vmatmul.mubr.f32.gmra.mxu0 %v163
        %v258 = vpop.f32.mrf.mxu0
        %v259 = vadd.f32 0.0, %v258
        %v260 = vpop.f32.mrf.mxu0
        %261 = vmatprep.mubr.f32.mxu0 0.0
        %262 = vmatmul.mubr.f32.gmra.mxu0 %v166
        %v263 = vpop.f32.mrf.mxu0
        %v264 = vadd.f32 0.0, %v263
        %v265 = vpop.f32.mrf.mxu0
        %266 = vmatprep.mubr.f32.mxu0 0.0
        %267 = vmatmul.mubr.f32.gmra.mxu0 %v169
        %v268 = vpop.f32.mrf.mxu0
        %v269 = vadd.f32 0.0, %v268
        %v270 = vpop.f32.mrf.mxu0
        %271 = vmatprep.mubr.f32.mxu0 0.0
        %272 = vmatmul.mubr.f32.gmra.mxu0 %v172
        %v273 = vpop.f32.mrf.mxu0
        %v274 = vadd.f32 0.0, %v273
        %v275 = vpop.f32.mrf.mxu0
        %276 = vmatprep.mubr.f32.mxu0 0.0
        %277 = vmatmul.mubr.f32.gmra.mxu0 %v175
        %v278 = vpop.f32.mrf.mxu0
        %v279 = vadd.f32 0.0, %v278
        %v280 = vpop.f32.mrf.mxu0
        %281 = vdwg.mxu0
        %v282 = vld [vmem:[%s1 + $0x70] sm:$0x1]
        %v283 = vld [vmem:[%s1 + $0x71] sm:$0x1]
        %vm284 = vcmask 261120
        %v285 = vsel %vm284, %v244, 0.0
        %v286 = vsel %vm284, %v249, 0.0
        %v287 = vadd.f32 %v285, %v286
        %v288 = vsel %vm284, %v254, 0.0
        %v289 = vadd.f32 %v287, %v288
        %v290 = vsel %vm284, %v259, 0.0
        %v291 = vadd.f32 %v289, %v290
        %v292 = vsel %vm284, %v264, 0.0
        %v293 = vadd.f32 %v291, %v292
        %v294 = vsel %vm284, %v269, 0.0
        %v295 = vadd.f32 %v293, %v294
        %v296 = vsel %vm284, %v274, 0.0
        %v297 = vadd.f32 %v295, %v296
        %v298 = vsel %vm284, %v279, 0.0
        %v299 = vadd.f32 %v297, %v298
        %v300 = vrot.slane %v299, 4
        %v301 = vadd.f32 %v299, %v300
        %v302 = vrot.slane %v301, 2
        %v303 = vadd.f32 %v301, %v302
        %v304 = vrot.slane %v303, 1
        %v305 = vadd.f32 %v303, %v304
        %v306 = vrcp.pop 64.0
        %v307 = vmul.f32 %v305, %v306
        %v308 = vmul.f32 %v244, %v244
        %v309 = vmul.f32 %v249, %v249
        %v310 = vmul.f32 %v254, %v254
        %v311 = vmul.f32 %v259, %v259
        %v312 = vmul.f32 %v264, %v264
        %v313 = vmul.f32 %v269, %v269
        %v314 = vmul.f32 %v274, %v274
        %v315 = vmul.f32 %v279, %v279
        %v316 = vsel %vm284, %v308, 0.0
        %v317 = vsel %vm284, %v309, 0.0
        %v318 = vadd.f32 %v316, %v317
        %v319 = vsel %vm284, %v310, 0.0
        %v320 = vadd.f32 %v318, %v319
        %v321 = vsel %vm284, %v311, 0.0
        %v322 = vadd.f32 %v320, %v321
        %v323 = vsel %vm284, %v312, 0.0
        %v324 = vadd.f32 %v322, %v323
        %v325 = vsel %vm284, %v313, 0.0
        %v326 = vadd.f32 %v324, %v325
        %v327 = vsel %vm284, %v314, 0.0
        %v328 = vadd.f32 %v326, %v327
        %v329 = vsel %vm284, %v315, 0.0
        %v330 = vadd.f32 %v328, %v329
        %v331 = vrot.slane %v330, 4
        %v332 = vadd.f32 %v330, %v331
        %v333 = vrot.slane %v332, 2
        %v334 = vadd.f32 %v332, %v333
        %v335 = vrot.slane %v334, 1
        %v336 = vadd.f32 %v334, %v335
        %v337 = vmul.f32 %v336, %v306
        %v338 = vmul.f32 %v307, %v307
        %v339 = vsub.f32 %v337, %v338
        %v340 = vmax.f32 %v339, 0.0
        %v341 = vsub.f32 %v244, %v307
        %v342 = vsub.f32 %v249, %v307
        %v343 = vsub.f32 %v254, %v307
        %v344 = vsub.f32 %v259, %v307
        %v345 = vsub.f32 %v264, %v307
        %v346 = vsub.f32 %v269, %v307
        %v347 = vsub.f32 %v274, %v307
        %v348 = vsub.f32 %v279, %v307
        %v349 = vadd.f32 %v340, 1e-05
        %v350 = vrsqrt.pop %v349
        %v351 = vmul.f32 %v341, %v350
        %v352 = vmul.f32 %v342, %v350
        %v353 = vmul.f32 %v343, %v350
        %v354 = vmul.f32 %v344, %v350
        %v355 = vmul.f32 %v345, %v350
        %v356 = vmul.f32 %v346, %v350
        %v357 = vmul.f32 %v347, %v350
        %v358 = vmul.f32 %v348, %v350
        %v359 = vlaneseq
        %v360 = vshrl.u32 %v359, 7
        %v361 = vsub.s32 0, %v360
        %v362 = vrot.slane %v282, %v361
        %v363 = vmul.f32 %v351, %v362
        %v364 = vmul.f32 %v352, %v362
        %v365 = vmul.f32 %v353, %v362
        %v366 = vmul.f32 %v354, %v362
        %v367 = vmul.f32 %v355, %v362
        %v368 = vmul.f32 %v356, %v362
        %v369 = vmul.f32 %v357, %v362
        %v370 = vmul.f32 %v358, %v362
        %v371 = vlaneseq
        %v372 = vshrl.u32 %v371, 7
        %v373 = vsub.s32 0, %v372
        %v374 = vrot.slane %v283, %v373
        %v375 = vadd.f32 %v363, %v374
        %v376 = vadd.f32 %v364, %v374
        %v377 = vadd.f32 %v365, %v374
        %v378 = vadd.f32 %v366, %v374
        %v379 = vadd.f32 %v367, %v374
        %v380 = vadd.f32 %v368, %v374
        %v381 = vadd.f32 %v369, %v374
        %v382 = vadd.f32 %v370, %v374
        %v383 = vmul.f32 %v375, 0.2
        %v384 = vmul.f32 %v376, 0.2
        %v385 = vmul.f32 %v377, 0.2
        %v386 = vmul.f32 %v378, 0.2
        %v387 = vmul.f32 %v379, 0.2
        %v388 = vmul.f32 %v380, 0.2
        %v389 = vmul.f32 %v381, 0.2
        %v390 = vmul.f32 %v382, 0.2
        %v391 = vmax.f32 %v375, %v383
        %v392 = vmax.f32 %v376, %v384
        %v393 = vmax.f32 %v377, %v385
        %v394 = vmax.f32 %v378, %v386
        %v395 = vmax.f32 %v379, %v387
        %v396 = vmax.f32 %v380, %v388
        %v397 = vmax.f32 %v381, %v389
        %v398 = vmax.f32 %v382, %v390
        %v399 = vld [vmem:[%s1 + $0x10] sm:$0xff]
        %v400 = vld [vmem:[%s1 + $0x18] sm:$0xff]
        %v401 = vld [vmem:[%s1 + $0x20] sm:$0xff]
        %v402 = vld [vmem:[%s1 + $0x28] sm:$0xff]
        %v404 = vsel %vm284, %v391, 0
        %v407 = vsel %vm284, %v392, 0
        %v410 = vsel %vm284, %v393, 0
        %v413 = vsel %vm284, %v394, 0
        %v416 = vsel %vm284, %v395, 0
        %v419 = vsel %vm284, %v396, 0
        %v422 = vsel %vm284, %v397, 0
        %v425 = vsel %vm284, %v398, 0
        %427 = vmatprep.subr.mxu0 0.0
        %428 = vmatpush1.msra.mxu0 0.0
        %429 = vmatprep.subr.mxu0 0.0
        %430 = vmatpush1.msra.mxu0 0.0
        %431 = vmatprep.subr.mxu0 0.0
        %432 = vmatpush1.msra.mxu0 0.0
        %433 = vmatprep.subr.mxu0 0.0
        %434 = vmatpush1.msra.mxu0 0.0
        %435 = vmatprep.subr.mxu0 0.0
        %436 = vmatpush1.msra.mxu0 0.0
        %437 = vmatprep.subr.mxu0 0.0
        %438 = vmatpush1.msra.mxu0 0.0
        %439 = vmatprep.subr.mxu0 0.0
        %440 = vmatpush1.msra.mxu0 0.0
        %441 = vmatprep.subr.mxu0 0.0
        %442 = vmatpush1.msra.mxu0 0.0
        %443 = vmatprep.subr.mxu0 0.0
        %444 = vmatpush1.msra.mxu0 0.0
        %445 = vmatprep.subr.mxu0 0.0
        %446 = vmatpush1.msra.mxu0 0.0
        %447 = vmatprep.subr.mxu0 0.0
        %448 = vmatpush1.msra.mxu0 0.0
        %449 = vmatprep.subr.mxu0 0.0
        %450 = vmatpush1.msra.mxu0 0.0
        %451 = vmatprep.subr.mxu0 0.0
        %452 = vmatpush1.msra.mxu0 %v402
        %453 = vmatprep.subr.mxu0 0.0
        %454 = vmatpush1.msra.mxu0 %v401
        %455 = vmatprep.subr.mxu0 0.0
        %456 = vmatpush1.msra.mxu0 %v400
        %457 = vmatprep.subr.mxu0 0.0
        %458 = vmatpush1.msra.mxu0 %v399
        %459 = vmatprep.subr.mxu0 0.0
        %460 = vmatpush2.msra.mxu0 0.0
        %461 = vmatprep.subr.mxu0 0.0
        %462 = vmatpush2.msra.mxu0 0.0
        %463 = vmatprep.subr.mxu0 0.0
        %464 = vmatpush2.msra.mxu0 0.0
        %465 = vmatprep.subr.mxu0 0.0
        %466 = vmatpush2.msra.mxu0 0.0
        %467 = vmatprep.subr.mxu0 0.0
        %468 = vmatpush2.msra.mxu0 0.0
        %469 = vmatprep.subr.mxu0 0.0
        %470 = vmatpush2.msra.mxu0 0.0
        %471 = vmatprep.subr.mxu0 0.0
        %472 = vmatpush2.msra.mxu0 0.0
        %473 = vmatprep.subr.mxu0 0.0
        %474 = vmatpush2.msra.mxu0 0.0
        %475 = vmatprep.subr.mxu0 0.0
        %476 = vmatpush2.msra.mxu0 0.0
        %477 = vmatprep.subr.mxu0 0.0
        %478 = vmatpush2.msra.mxu0 0.0
        %479 = vmatprep.subr.mxu0 0.0
        %480 = vmatpush2.msra.mxu0 0.0
        %481 = vmatprep.subr.mxu0 0.0
        %482 = vmatpush2.msra.mxu0 0.0
        %483 = vmatprep.subr.mxu0 0.0
        %484 = vmatpush2.msra.mxu0 0.0
        %485 = vmatprep.subr.mxu0 0.0
        %486 = vmatpush2.msra.mxu0 0.0
        %487 = vmatprep.subr.mxu0 0.0
        %488 = vmatpush2.msra.mxu0 0.0
        %489 = vmatprep.subr.mxu0 0.0
        %490 = vmatpush2.msra.mxu0 0.0
        %491 = vmatprep.mubr.f32.mxu0 0.0
        %492 = vmatmul.mubr.f32.gmra.mxu0 %v404
        %v493 = vpop.f32.mrf.mxu0
        %v494 = vadd.f32 0.0, %v493
        %v495 = vpop.f32.mrf.mxu0
        %496 = vmatprep.mubr.f32.mxu0 0.0
        %497 = vmatmul.mubr.f32.gmra.mxu0 %v407
        %v498 = vpop.f32.mrf.mxu0
        %v499 = vadd.f32 0.0, %v498
        %v500 = vpop.f32.mrf.mxu0
        %501 = vmatprep.mubr.f32.mxu0 0.0
        %502 = vmatmul.mubr.f32.gmra.mxu0 %v410
        %v503 = vpop.f32.mrf.mxu0
        %v504 = vadd.f32 0.0, %v503
        %v505 = vpop.f32.mrf.mxu0
        %506 = vmatprep.mubr.f32.mxu0 0.0
        %507 = vmatmul.mubr.f32.gmra.mxu0 %v413
        %v508 = vpop.f32.mrf.mxu0
        %v509 = vadd.f32 0.0, %v508
        %v510 = vpop.f32.mrf.mxu0
        %511 = vmatprep.mubr.f32.mxu0 0.0
        %512 = vmatmul.mubr.f32.gmra.mxu0 %v416
        %v513 = vpop.f32.mrf.mxu0
        %v514 = vadd.f32 0.0, %v513
        %v515 = vpop.f32.mrf.mxu0
        %516 = vmatprep.mubr.f32.mxu0 0.0
        %517 = vmatmul.mubr.f32.gmra.mxu0 %v419
        %v518 = vpop.f32.mrf.mxu0
        %v519 = vadd.f32 0.0, %v518
        %v520 = vpop.f32.mrf.mxu0
        %521 = vmatprep.mubr.f32.mxu0 0.0
        %522 = vmatmul.mubr.f32.gmra.mxu0 %v422
        %v523 = vpop.f32.mrf.mxu0
        %v524 = vadd.f32 0.0, %v523
        %v525 = vpop.f32.mrf.mxu0
        %526 = vmatprep.mubr.f32.mxu0 0.0
        %527 = vmatmul.mubr.f32.gmra.mxu0 %v425
        %v528 = vpop.f32.mrf.mxu0
        %v529 = vadd.f32 0.0, %v528
        %v530 = vpop.f32.mrf.mxu0
        %531 = vdwg.mxu0
        %v532 = vld [vmem:[%s1 + $0x72] sm:$0x1]
        %v533 = vld [vmem:[%s1 + $0x73] sm:$0x1]
        %v534 = vsel %vm284, %v494, 0.0
        %v535 = vsel %vm284, %v499, 0.0
        %v536 = vadd.f32 %v534, %v535
        %v537 = vsel %vm284, %v504, 0.0
        %v538 = vadd.f32 %v536, %v537
        %v539 = vsel %vm284, %v509, 0.0
        %v540 = vadd.f32 %v538, %v539
        %v541 = vsel %vm284, %v514, 0.0
        %v542 = vadd.f32 %v540, %v541
        %v543 = vsel %vm284, %v519, 0.0
        %v544 = vadd.f32 %v542, %v543
        %v545 = vsel %vm284, %v524, 0.0
        %v546 = vadd.f32 %v544, %v545
        %v547 = vsel %vm284, %v529, 0.0
        %v548 = vadd.f32 %v546, %v547
        %v549 = vrot.slane %v548, 4
        %v550 = vadd.f32 %v548, %v549
        %v551 = vrot.slane %v550, 2
        %v552 = vadd.f32 %v550, %v551
        %v553 = vrot.slane %v552, 1
        %v554 = vadd.f32 %v552, %v553
        %v555 = vmul.f32 %v554, %v306
        %v556 = vmul.f32 %v494, %v494
        %v557 = vmul.f32 %v499, %v499
        %v558 = vmul.f32 %v504, %v504
        %v559 = vmul.f32 %v509, %v509
        %v560 = vmul.f32 %v514, %v514
        %v561 = vmul.f32 %v519, %v519
        %v562 = vmul.f32 %v524, %v524
        %v563 = vmul.f32 %v529, %v529
        %v564 = vsel %vm284, %v556, 0.0
        %v565 = vsel %vm284, %v557, 0.0
        %v566 = vadd.f32 %v564, %v565
        %v567 = vsel %vm284, %v558, 0.0
        %v568 = vadd.f32 %v566, %v567
        %v569 = vsel %vm284, %v559, 0.0
        %v570 = vadd.f32 %v568, %v569
        %v571 = vsel %vm284, %v560, 0.0
        %v572 = vadd.f32 %v570, %v571
        %v573 = vsel %vm284, %v561, 0.0
        %v574 = vadd.f32 %v572, %v573
        %v575 = vsel %vm284, %v562, 0.0
        %v576 = vadd.f32 %v574, %v575
        %v577 = vsel %vm284, %v563, 0.0
        %v578 = vadd.f32 %v576, %v577
        %v579 = vrot.slane %v578, 4
        %v580 = vadd.f32 %v578, %v579
        %v581 = vrot.slane %v580, 2
        %v582 = vadd.f32 %v580, %v581
        %v583 = vrot.slane %v582, 1
        %v584 = vadd.f32 %v582, %v583
        %v585 = vmul.f32 %v584, %v306
        %v586 = vmul.f32 %v555, %v555
        %v587 = vsub.f32 %v585, %v586
        %v588 = vmax.f32 %v587, 0.0
        %v589 = vsub.f32 %v494, %v555
        %v590 = vsub.f32 %v499, %v555
        %v591 = vsub.f32 %v504, %v555
        %v592 = vsub.f32 %v509, %v555
        %v593 = vsub.f32 %v514, %v555
        %v594 = vsub.f32 %v519, %v555
        %v595 = vsub.f32 %v524, %v555
        %v596 = vsub.f32 %v529, %v555
        %v597 = vadd.f32 %v588, 1e-05
        %v598 = vrsqrt.pop %v597
        %v599 = vmul.f32 %v589, %v598
        %v600 = vmul.f32 %v590, %v598
        %v601 = vmul.f32 %v591, %v598
        %v602 = vmul.f32 %v592, %v598
        %v603 = vmul.f32 %v593, %v598
        %v604 = vmul.f32 %v594, %v598
        %v605 = vmul.f32 %v595, %v598
        %v606 = vmul.f32 %v596, %v598
        %v607 = vlaneseq
        %v608 = vshrl.u32 %v607, 7
        %v609 = vsub.s32 0, %v608
        %v610 = vrot.slane %v532, %v609
        %v611 = vmul.f32 %v599, %v610
        %v612 = vmul.f32 %v600, %v610
        %v613 = vmul.f32 %v601, %v610
        %v614 = vmul.f32 %v602, %v610
        %v615 = vmul.f32 %v603, %v610
        %v616 = vmul.f32 %v604, %v610
        %v617 = vmul.f32 %v605, %v610
        %v618 = vmul.f32 %v606, %v610
        %v619 = vlaneseq
        %v620 = vshrl.u32 %v619, 7
        %v621 = vsub.s32 0, %v620
        %v622 = vrot.slane %v533, %v621
        %v623 = vadd.f32 %v611, %v622
        %v624 = vadd.f32 %v612, %v622
        %v625 = vadd.f32 %v613, %v622
        %v626 = vadd.f32 %v614, %v622
        %v627 = vadd.f32 %v615, %v622
        %v628 = vadd.f32 %v616, %v622
        %v629 = vadd.f32 %v617, %v622
        %v630 = vadd.f32 %v618, %v622
        %v631 = vmul.f32 %v623, 0.2
        %v632 = vmul.f32 %v624, 0.2
        %v633 = vmul.f32 %v625, 0.2
        %v634 = vmul.f32 %v626, 0.2
        %v635 = vmul.f32 %v627, 0.2
        %v636 = vmul.f32 %v628, 0.2
        %v637 = vmul.f32 %v629, 0.2
        %v638 = vmul.f32 %v630, 0.2
        %v639 = vmax.f32 %v623, %v631
        %v640 = vmax.f32 %v624, %v632
        %v641 = vmax.f32 %v625, %v633
        %v642 = vmax.f32 %v626, %v634
        %v643 = vmax.f32 %v627, %v635
        %v644 = vmax.f32 %v628, %v636
        %v645 = vmax.f32 %v629, %v637
        %v646 = vmax.f32 %v630, %v638
        %v647 = vld [vmem:[%s1 + $0x30] sm:$0xff]
        %v648 = vld [vmem:[%s1 + $0x38] sm:$0xff]
        %v649 = vld [vmem:[%s1 + $0x40] sm:$0xff]
        %v650 = vld [vmem:[%s1 + $0x48] sm:$0xff]
        %v652 = vsel %vm284, %v639, 0
        %v655 = vsel %vm284, %v640, 0
        %v658 = vsel %vm284, %v641, 0
        %v661 = vsel %vm284, %v642, 0
        %v664 = vsel %vm284, %v643, 0
        %v667 = vsel %vm284, %v644, 0
        %v670 = vsel %vm284, %v645, 0
        %v673 = vsel %vm284, %v646, 0
        %675 = vmatprep.subr.mxu0 0.0
        %676 = vmatpush1.msra.mxu0 0.0
        %677 = vmatprep.subr.mxu0 0.0
        %678 = vmatpush1.msra.mxu0 0.0
        %679 = vmatprep.subr.mxu0 0.0
        %680 = vmatpush1.msra.mxu0 0.0
        %681 = vmatprep.subr.mxu0 0.0
        %682 = vmatpush1.msra.mxu0 0.0
        %683 = vmatprep.subr.mxu0 0.0
        %684 = vmatpush1.msra.mxu0 0.0
        %685 = vmatprep.subr.mxu0 0.0
        %686 = vmatpush1.msra.mxu0 0.0
        %687 = vmatprep.subr.mxu0 0.0
        %688 = vmatpush1.msra.mxu0 0.0
        %689 = vmatprep.subr.mxu0 0.0
        %690 = vmatpush1.msra.mxu0 0.0
        %691 = vmatprep.subr.mxu0 0.0
        %692 = vmatpush1.msra.mxu0 0.0
        %693 = vmatprep.subr.mxu0 0.0
        %694 = vmatpush1.msra.mxu0 0.0
        %695 = vmatprep.subr.mxu0 0.0
        %696 = vmatpush1.msra.mxu0 0.0
        %697 = vmatprep.subr.mxu0 0.0
        %698 = vmatpush1.msra.mxu0 0.0
        %699 = vmatprep.subr.mxu0 0.0
        %700 = vmatpush1.msra.mxu0 %v650
        %701 = vmatprep.subr.mxu0 0.0
        %702 = vmatpush1.msra.mxu0 %v649
        %703 = vmatprep.subr.mxu0 0.0
        %704 = vmatpush1.msra.mxu0 %v648
        %705 = vmatprep.subr.mxu0 0.0
        %706 = vmatpush1.msra.mxu0 %v647
        %707 = vmatprep.subr.mxu0 0.0
        %708 = vmatpush2.msra.mxu0 0.0
        %709 = vmatprep.subr.mxu0 0.0
        %710 = vmatpush2.msra.mxu0 0.0
        %711 = vmatprep.subr.mxu0 0.0
        %712 = vmatpush2.msra.mxu0 0.0
        %713 = vmatprep.subr.mxu0 0.0
        %714 = vmatpush2.msra.mxu0 0.0
        %715 = vmatprep.subr.mxu0 0.0
        %716 = vmatpush2.msra.mxu0 0.0
        %717 = vmatprep.subr.mxu0 0.0
        %718 = vmatpush2.msra.mxu0 0.0
        %719 = vmatprep.subr.mxu0 0.0
        %720 = vmatpush2.msra.mxu0 0.0
        %721 = vmatprep.subr.mxu0 0.0
        %722 = vmatpush2.msra.mxu0 0.0
        %723 = vmatprep.subr.mxu0 0.0
        %724 = vmatpush2.msra.mxu0 0.0
        %725 = vmatprep.subr.mxu0 0.0
        %726 = vmatpush2.msra.mxu0 0.0
        %727 = vmatprep.subr.mxu0 0.0
        %728 = vmatpush2.msra.mxu0 0.0
        %729 = vmatprep.subr.mxu0 0.0
        %730 = vmatpush2.msra.mxu0 0.0
        %731 = vmatprep.subr.mxu0 0.0
        %732 = vmatpush2.msra.mxu0 0.0
        %733 = vmatprep.subr.mxu0 0.0
        %734 = vmatpush2.msra.mxu0 0.0
        %735 = vmatprep.subr.mxu0 0.0
        %736 = vmatpush2.msra.mxu0 0.0
        %737 = vmatprep.subr.mxu0 0.0
        %738 = vmatpush2.msra.mxu0 0.0
        %739 = vmatprep.mubr.f32.mxu0 0.0
        %740 = vmatmul.mubr.f32.gmra.mxu0 %v652
        %v741 = vpop.f32.mrf.mxu0
        %v742 = vadd.f32 0.0, %v741
        %v743 = vpop.f32.mrf.mxu0
        %744 = vmatprep.mubr.f32.mxu0 0.0
        %745 = vmatmul.mubr.f32.gmra.mxu0 %v655
        %v746 = vpop.f32.mrf.mxu0
        %v747 = vadd.f32 0.0, %v746
        %v748 = vpop.f32.mrf.mxu0
        %749 = vmatprep.mubr.f32.mxu0 0.0
        %750 = vmatmul.mubr.f32.gmra.mxu0 %v658
        %v751 = vpop.f32.mrf.mxu0
        %v752 = vadd.f32 0.0, %v751
        %v753 = vpop.f32.mrf.mxu0
        %754 = vmatprep.mubr.f32.mxu0 0.0
        %755 = vmatmul.mubr.f32.gmra.mxu0 %v661
        %v756 = vpop.f32.mrf.mxu0
        %v757 = vadd.f32 0.0, %v756
        %v758 = vpop.f32.mrf.mxu0
        %759 = vmatprep.mubr.f32.mxu0 0.0
        %760 = vmatmul.mubr.f32.gmra.mxu0 %v664
        %v761 = vpop.f32.mrf.mxu0
        %v762 = vadd.f32 0.0, %v761
        %v763 = vpop.f32.mrf.mxu0
        %764 = vmatprep.mubr.f32.mxu0 0.0
        %765 = vmatmul.mubr.f32.gmra.mxu0 %v667
        %v766 = vpop.f32.mrf.mxu0
        %v767 = vadd.f32 0.0, %v766
        %v768 = vpop.f32.mrf.mxu0
        %769 = vmatprep.mubr.f32.mxu0 0.0
        %770 = vmatmul.mubr.f32.gmra.mxu0 %v670
        %v771 = vpop.f32.mrf.mxu0
        %v772 = vadd.f32 0.0, %v771
        %v773 = vpop.f32.mrf.mxu0
        %774 = vmatprep.mubr.f32.mxu0 0.0
        %775 = vmatmul.mubr.f32.gmra.mxu0 %v673
        %v776 = vpop.f32.mrf.mxu0
        %v777 = vadd.f32 0.0, %v776
        %v778 = vpop.f32.mrf.mxu0
        %779 = vdwg.mxu0
        %v780 = vld [vmem:[%s1 + $0x74] sm:$0x1]
        %v781 = vld [vmem:[%s1 + $0x75] sm:$0x1]
        %v782 = vsel %vm284, %v742, 0.0
        %v783 = vsel %vm284, %v747, 0.0
        %v784 = vadd.f32 %v782, %v783
        %v785 = vsel %vm284, %v752, 0.0
        %v786 = vadd.f32 %v784, %v785
        %v787 = vsel %vm284, %v757, 0.0
        %v788 = vadd.f32 %v786, %v787
        %v789 = vsel %vm284, %v762, 0.0
        %v790 = vadd.f32 %v788, %v789
        %v791 = vsel %vm284, %v767, 0.0
        %v792 = vadd.f32 %v790, %v791
        %v793 = vsel %vm284, %v772, 0.0
        %v794 = vadd.f32 %v792, %v793
        %v795 = vsel %vm284, %v777, 0.0
        %v796 = vadd.f32 %v794, %v795
        %v797 = vrot.slane %v796, 4
        %v798 = vadd.f32 %v796, %v797
        %v799 = vrot.slane %v798, 2
        %v800 = vadd.f32 %v798, %v799
        %v801 = vrot.slane %v800, 1
        %v802 = vadd.f32 %v800, %v801
        %v803 = vmul.f32 %v802, %v306
        %v804 = vmul.f32 %v742, %v742
        %v805 = vmul.f32 %v747, %v747
        %v806 = vmul.f32 %v752, %v752
        %v807 = vmul.f32 %v757, %v757
        %v808 = vmul.f32 %v762, %v762
        %v809 = vmul.f32 %v767, %v767
        %v810 = vmul.f32 %v772, %v772
        %v811 = vmul.f32 %v777, %v777
        %v812 = vsel %vm284, %v804, 0.0
        %v813 = vsel %vm284, %v805, 0.0
        %v814 = vadd.f32 %v812, %v813
        %v815 = vsel %vm284, %v806, 0.0
        %v816 = vadd.f32 %v814, %v815
        %v817 = vsel %vm284, %v807, 0.0
        %v818 = vadd.f32 %v816, %v817
        %v819 = vsel %vm284, %v808, 0.0
        %v820 = vadd.f32 %v818, %v819
        %v821 = vsel %vm284, %v809, 0.0
        %v822 = vadd.f32 %v820, %v821
        %v823 = vsel %vm284, %v810, 0.0
        %v824 = vadd.f32 %v822, %v823
        %v825 = vsel %vm284, %v811, 0.0
        %v826 = vadd.f32 %v824, %v825
        %v827 = vrot.slane %v826, 4
        %v828 = vadd.f32 %v826, %v827
        %v829 = vrot.slane %v828, 2
        %v830 = vadd.f32 %v828, %v829
        %v831 = vrot.slane %v830, 1
        %v832 = vadd.f32 %v830, %v831
        %v833 = vmul.f32 %v832, %v306
        %v834 = vmul.f32 %v803, %v803
        %v835 = vsub.f32 %v833, %v834
        %v836 = vmax.f32 %v835, 0.0
        %v837 = vsub.f32 %v742, %v803
        %v838 = vsub.f32 %v747, %v803
        %v839 = vsub.f32 %v752, %v803
        %v840 = vsub.f32 %v757, %v803
        %v841 = vsub.f32 %v762, %v803
        %v842 = vsub.f32 %v767, %v803
        %v843 = vsub.f32 %v772, %v803
        %v844 = vsub.f32 %v777, %v803
        %v845 = vadd.f32 %v836, 1e-05
        %v846 = vrsqrt.pop %v845
        %v847 = vmul.f32 %v837, %v846
        %v848 = vmul.f32 %v838, %v846
        %v849 = vmul.f32 %v839, %v846
        %v850 = vmul.f32 %v840, %v846
        %v851 = vmul.f32 %v841, %v846
        %v852 = vmul.f32 %v842, %v846
        %v853 = vmul.f32 %v843, %v846
        %v854 = vmul.f32 %v844, %v846
        %v855 = vlaneseq
        %v856 = vshrl.u32 %v855, 7
        %v857 = vsub.s32 0, %v856
        %v858 = vrot.slane %v780, %v857
        %v859 = vmul.f32 %v847, %v858
        %v860 = vmul.f32 %v848, %v858
        %v861 = vmul.f32 %v849, %v858
        %v862 = vmul.f32 %v850, %v858
        %v863 = vmul.f32 %v851, %v858
        %v864 = vmul.f32 %v852, %v858
        %v865 = vmul.f32 %v853, %v858
        %v866 = vmul.f32 %v854, %v858
        %v867 = vlaneseq
        %v868 = vshrl.u32 %v867, 7
        %v869 = vsub.s32 0, %v868
        %v870 = vrot.slane %v781, %v869
        %v871 = vadd.f32 %v859, %v870
        %v872 = vadd.f32 %v860, %v870
        %v873 = vadd.f32 %v861, %v870
        %v874 = vadd.f32 %v862, %v870
        %v875 = vadd.f32 %v863, %v870
        %v876 = vadd.f32 %v864, %v870
        %v877 = vadd.f32 %v865, %v870
        %v878 = vadd.f32 %v866, %v870
        %v879 = vmul.f32 %v871, 0.2
        %v880 = vmul.f32 %v872, 0.2
        %v881 = vmul.f32 %v873, 0.2
        %v882 = vmul.f32 %v874, 0.2
        %v883 = vmul.f32 %v875, 0.2
        %v884 = vmul.f32 %v876, 0.2
        %v885 = vmul.f32 %v877, 0.2
        %v886 = vmul.f32 %v878, 0.2
        %v887 = vmax.f32 %v871, %v879
        %v888 = vmax.f32 %v872, %v880
        %v889 = vmax.f32 %v873, %v881
        %v890 = vmax.f32 %v874, %v882
        %v891 = vmax.f32 %v875, %v883
        %v892 = vmax.f32 %v876, %v884
        %v893 = vmax.f32 %v877, %v885
        %v894 = vmax.f32 %v878, %v886
        %v895 = vld [vmem:[%s1 + $0x50] sm:$0xff]
        %v896 = vld [vmem:[%s1 + $0x58] sm:$0xff]
        %v897 = vld [vmem:[%s1 + $0x60] sm:$0xff]
        %v898 = vld [vmem:[%s1 + $0x68] sm:$0xff]
        %v899 = vld [vmem:[%s1 + $0x76] sm:$0x1]
        %v900 = vlaneseq
        %v901 = vshrl.u32 %v900, 7
        %v902 = vsub.s32 0, %v901
        %v903 = vrot.slane %v899, %v902
        %v905 = vsel %vm284, %v887, 0
        %v908 = vsel %vm284, %v888, 0
        %v911 = vsel %vm284, %v889, 0
        %v914 = vsel %vm284, %v890, 0
        %v917 = vsel %vm284, %v891, 0
        %v920 = vsel %vm284, %v892, 0
        %v923 = vsel %vm284, %v893, 0
        %v926 = vsel %vm284, %v894, 0
        %928 = vmatprep.subr.mxu0 0.0
        %929 = vmatpush1.msra.mxu0 0.0
        %930 = vmatprep.subr.mxu0 0.0
        %931 = vmatpush1.msra.mxu0 0.0
        %932 = vmatprep.subr.mxu0 0.0
        %933 = vmatpush1.msra.mxu0 0.0
        %934 = vmatprep.subr.mxu0 0.0
        %935 = vmatpush1.msra.mxu0 0.0
        %936 = vmatprep.subr.mxu0 0.0
        %937 = vmatpush1.msra.mxu0 0.0
        %938 = vmatprep.subr.mxu0 0.0
        %939 = vmatpush1.msra.mxu0 0.0
        %940 = vmatprep.subr.mxu0 0.0
        %941 = vmatpush1.msra.mxu0 0.0
        %942 = vmatprep.subr.mxu0 0.0
        %943 = vmatpush1.msra.mxu0 0.0
        %944 = vmatprep.subr.mxu0 0.0
        %945 = vmatpush1.msra.mxu0 0.0
        %946 = vmatprep.subr.mxu0 0.0
        %947 = vmatpush1.msra.mxu0 0.0
        %948 = vmatprep.subr.mxu0 0.0
        %949 = vmatpush1.msra.mxu0 0.0
        %950 = vmatprep.subr.mxu0 0.0
        %951 = vmatpush1.msra.mxu0 0.0
        %952 = vmatprep.subr.mxu0 0.0
        %953 = vmatpush1.msra.mxu0 %v898
        %954 = vmatprep.subr.mxu0 0.0
        %955 = vmatpush1.msra.mxu0 %v897
        %956 = vmatprep.subr.mxu0 0.0
        %957 = vmatpush1.msra.mxu0 %v896
        %958 = vmatprep.subr.mxu0 0.0
        %959 = vmatpush1.msra.mxu0 %v895
        %960 = vmatprep.subr.mxu0 0.0
        %961 = vmatpush2.msra.mxu0 0.0
        %962 = vmatprep.subr.mxu0 0.0
        %963 = vmatpush2.msra.mxu0 0.0
        %964 = vmatprep.subr.mxu0 0.0
        %965 = vmatpush2.msra.mxu0 0.0
        %966 = vmatprep.subr.mxu0 0.0
        %967 = vmatpush2.msra.mxu0 0.0
        %968 = vmatprep.subr.mxu0 0.0
        %969 = vmatpush2.msra.mxu0 0.0
        %970 = vmatprep.subr.mxu0 0.0
        %971 = vmatpush2.msra.mxu0 0.0
        %972 = vmatprep.subr.mxu0 0.0
        %973 = vmatpush2.msra.mxu0 0.0
        %974 = vmatprep.subr.mxu0 0.0
        %975 = vmatpush2.msra.mxu0 0.0
        %976 = vmatprep.subr.mxu0 0.0
        %977 = vmatpush2.msra.mxu0 0.0
        %978 = vmatprep.subr.mxu0 0.0
        %979 = vmatpush2.msra.mxu0 0.0
        %980 = vmatprep.subr.mxu0 0.0
        %981 = vmatpush2.msra.mxu0 0.0
        %982 = vmatprep.subr.mxu0 0.0
        %983 = vmatpush2.msra.mxu0 0.0
        %984 = vmatprep.subr.mxu0 0.0
        %985 = vmatpush2.msra.mxu0 0.0
        %986 = vmatprep.subr.mxu0 0.0
        %987 = vmatpush2.msra.mxu0 0.0
        %988 = vmatprep.subr.mxu0 0.0
        %989 = vmatpush2.msra.mxu0 0.0
        %990 = vmatprep.subr.mxu0 0.0
        %991 = vmatpush2.msra.mxu0 0.0
        %992 = vmatprep.mubr.f32.mxu0 0.0
        %993 = vmatmul.mubr.f32.gmra.mxu0 %v905
        %v994 = vpop.f32.mrf.mxu0
        %v995 = vadd.f32 %v903, %v994
        %v996 = vpop.f32.mrf.mxu0
        %997 = vmatprep.mubr.f32.mxu0 0.0
        %998 = vmatmul.mubr.f32.gmra.mxu0 %v908
        %v999 = vpop.f32.mrf.mxu0
        %v1000 = vadd.f32 %v903, %v999
        %v1001 = vpop.f32.mrf.mxu0
        %1002 = vmatprep.mubr.f32.mxu0 0.0
        %1003 = vmatmul.mubr.f32.gmra.mxu0 %v911
        %v1004 = vpop.f32.mrf.mxu0
        %v1005 = vadd.f32 %v903, %v1004
        %v1006 = vpop.f32.mrf.mxu0
        %1007 = vmatprep.mubr.f32.mxu0 0.0
        %1008 = vmatmul.mubr.f32.gmra.mxu0 %v914
        %v1009 = vpop.f32.mrf.mxu0
        %v1010 = vadd.f32 %v903, %v1009
        %v1011 = vpop.f32.mrf.mxu0
        %1012 = vmatprep.mubr.f32.mxu0 0.0
        %1013 = vmatmul.mubr.f32.gmra.mxu0 %v917
        %v1014 = vpop.f32.mrf.mxu0
        %v1015 = vadd.f32 %v903, %v1014
        %v1016 = vpop.f32.mrf.mxu0
        %1017 = vmatprep.mubr.f32.mxu0 0.0
        %1018 = vmatmul.mubr.f32.gmra.mxu0 %v920
        %v1019 = vpop.f32.mrf.mxu0
        %v1020 = vadd.f32 %v903, %v1019
        %v1021 = vpop.f32.mrf.mxu0
        %1022 = vmatprep.mubr.f32.mxu0 0.0
        %1023 = vmatmul.mubr.f32.gmra.mxu0 %v923
        %v1024 = vpop.f32.mrf.mxu0
        %v1025 = vadd.f32 %v903, %v1024
        %v1026 = vpop.f32.mrf.mxu0
        %1027 = vmatprep.mubr.f32.mxu0 0.0
        %1028 = vmatmul.mubr.f32.gmra.mxu0 %v926
        %v1029 = vpop.f32.mrf.mxu0
        %v1030 = vadd.f32 %v903, %v1029
        %v1031 = vpop.f32.mrf.mxu0
        %1032 = vdwg.mxu0
        %1033 = vst [vmem:[%s136] sm:$0xff] %v995
        %1034 = vst [vmem:[%s136 + $0x8] sm:$0xff] %v1000
        %1035 = vst [vmem:[%s136 + $0x10] sm:$0xff] %v1005
        %1036 = vst [vmem:[%s136 + $0x18] sm:$0xff] %v1010
        %1037 = vst [vmem:[%s136 + $0x20] sm:$0xff] %v1015
        %1038 = vst [vmem:[%s136 + $0x28] sm:$0xff] %v1020
        %1039 = vst [vmem:[%s136 + $0x30] sm:$0xff] %v1025
        %1040 = vst [vmem:[%s136 + $0x38] sm:$0xff] %v1030
        %s1041 = sand.u32 %s71, 1
        %s1042 = scalar_lea.sflag [#allocation3], %s1041
        %s1043 = sand.u32 %s71, 1
        %s1044 = smul.addr %s1043, 64
        %s1045 = scalar_lea.vmem [#allocation2], %s1044
        // Predicated region
        $region29: #{tpu_custom_call.1} parent=27 // pred_check
          %p1046 = pneg %p81
        $region30: #{tpu_custom_call.1} parent=27 // pred_check_branch
          %1048 = sbr.rel (%p1046) target = $region32
        $region31: #{tpu_custom_call.1} parent=27 // pred_region
          %s1050 = ssub.s32 1024, 1024
          %1051 = vsyncadd %s1042, %s1050
          %s1052 = smul.addr %s16, 8
          %s1053 = smul.addr %s1052, 128
          %s1054 = scalar_lea.hbm %s2, %s1053
          %s1055 = sshll.u32 %s1045, 4
          %s1056 = int_to_ptr.vmem [resolvable:$true] %s1055
          %1061 = dma.vmem_to_hbm [thread:$0]  %s1056, 1024, %s1054, %s1042, 128, 128, 8
        $region32: #{tpu_custom_call.1} parent=27 // pred_fallthru
          _
      $region28: #{tpu_custom_call.1} parent=5 // pred_fallthru
        _
      %p1062 = scmp.le.s32.totalorder 2, %s11
      // Predicated region
      $region33: #{tpu_custom_call.1} parent=5 // pred_check
        %p1063 = pneg %p1062
      $region34: #{tpu_custom_call.1} parent=5 // pred_check_branch
        %1065 = sbr.rel (%p1063) target = $region36
      $region35: #{tpu_custom_call.1} parent=5 // pred_region
        %s1066 = ssub.s32 %s11, 2
        // Predicated region
        $region37: #{tpu_custom_call.1} parent=35 // pred_check
          %p1067 = pneg %p87
        $region38: #{tpu_custom_call.1} parent=35 // pred_check_branch
          %1069 = sbr.rel (%p1067) target = $region40
        $region39: #{tpu_custom_call.1} parent=35 // pred_region
          %s1070 = sand.u32 %s72, 1
          %s1071 = scalar_lea.sflag [#allocation3], %s1070
          %s1072 = sand.u32 %s72, 1
          %s1073 = smul.addr %s1072, 64
          %s1074 = scalar_lea.vmem [#allocation2], %s1073
          %1075 = dma.done %s1071, 1024
        $region40: #{tpu_custom_call.1} parent=35 // pred_fallthru
          _
      $region36: #{tpu_custom_call.1} parent=5 // pred_fallthru
        _
    $region6: #{tpu_custom_call.1} parent=1 // loop_footer
      %s15 = sadd.s32 1, %s11
    $region7: #{tpu_custom_call.1} parent=1 // loop_footer_branch
      %10 = sbr.rel target = $region3
    $region8: #{tpu_custom_call.1} parent=1 // loop_exit
      _
    %1076 = vsyncpa [#allocation3], 1
    %s1077 = scalar_lea.sflag [#allocation3], 1
    %1078 = vsyncpa %s1077, 1

</llo_original>
